<compile_context>
chip_gen: v7x
topology: tpu7x:2x2x1
jax: 0.10.0
libtpu: 0.0.40
codegen_flags: <defaults>
</compile_context>

<pallas_src>
import jax
import jax.numpy as jnp
from jax.experimental import pallas as pl
from jax.experimental.pallas import tpu as pltpu


def residual_modulate_kernel(gamma_ref, beta_ref, x_ref, out_ref):
    # Per-grid-step shapes:
    #   gamma_ref/beta_ref : (1, F, 1)   -- sublane-major, broadcast along lanes
    #   x_ref/out_ref      : (1, F, L_tile)
    x = x_ref[...]
    y = gamma_ref[...] * x + beta_ref[...]        # fn(x, context): FiLM modulation
    out_ref[...] = (y + x).astype(out_ref.dtype)  # Residual: fn(x, ...) + x


def _pick_l_tile(L, max_l_tile):
    """Largest lane-dense L tile: whole L if it fits the cap, else the biggest
    multiple-of-128 divisor of L that is <= max_l_tile."""
    if L <= max_l_tile:
        return L
    t = (max_l_tile // 128) * 128
    while t >= 128:
        if L % t == 0:
            return t
        t -= 128
    return L  # no clean divisor; fall back to a single full-L block


def film_context_mlp(context, w1, b1, w2, b2, feat):
    """Hoisted context MLP (plain XLA, trivial FLOPs).
    Returns gamma, beta shaped (B, feat, 1) (sublane-major for the kernel)."""
    if context.ndim == 3:
        context = jnp.squeeze(context, axis=1)    # (B, 1, Cctx) -> (B, Cctx)
    ctx = context.astype(jnp.float32)
    h = ctx @ w1.astype(jnp.float32) + b1.astype(jnp.float32)
    h = h * jax.nn.sigmoid(h)                     # SiLU
    p = h @ w2.astype(jnp.float32) + b2.astype(jnp.float32)
    gamma, beta = p[:, :feat], p[:, feat:]        # == chunk(params, 2, dim=1)
    return gamma[:, :, None], beta[:, :, None]    # (B, feat, 1)


def residual_film_forward(x, context, w1, b1, w2, b2, *, max_l_tile=2048):
    """Residual(FiLM) forward: gamma*x + beta + x, fused in one Pallas pass."""
    B, F, L = x.shape
    Cctx = context.shape[-1]
    F2 = 2 * F
    assert w1.shape == (Cctx, F2) and w2.shape == (F2, F2)
    assert b1.shape == (F2,) and b2.shape == (F2,)

    # fn's context MLP: computed once for the whole batch, outside the grid.
    gamma, beta = film_context_mlp(context, w1, b1, w2, b2, F)

    l_tile = _pick_l_tile(L, max_l_tile)
    grid = (B, pl.cdiv(L, l_tile))

    itemsize = jnp.dtype(x.dtype).itemsize
    cost = pl.CostEstimate(
        flops=3 * B * F * L,                                  # mul + 2 adds
        transcendentals=0,                                    # MLP hoisted out
        bytes_accessed=2 * B * F * L * itemsize + 2 * B * F * 4,
    )

    return pl.pallas_call(
        residual_modulate_kernel,
        out_shape=jax.ShapeDtypeStruct((B, F, L), x.dtype),
        grid_spec=pltpu.PrefetchScalarGridSpec(
            num_scalar_prefetch=0,
            grid=grid,
            in_specs=[
                pl.BlockSpec((1, F, 1), lambda b, l: (b, 0, 0)),       # gamma
                pl.BlockSpec((1, F, 1), lambda b, l: (b, 0, 0)),       # beta
                pl.BlockSpec((1, F, l_tile), lambda b, l: (b, 0, l)),  # x
            ],
            out_specs=pl.BlockSpec((1, F, l_tile), lambda b, l: (b, 0, l)),
        ),
        compiler_params=pltpu.CompilerParams(
            dimension_semantics=("parallel", "parallel"),  # megacore-shardable
            vmem_limit_bytes=64 * 1024 * 1024,
        ),
        cost_estimate=cost,
    )(gamma, beta, x)


def residual_film_reference(x, context, w1, b1, w2, b2):
    """Pure-JAX reference for Residual(FiLM): fn(x, context) + x."""
    if context.ndim == 3:
        context = jnp.squeeze(context, axis=1)
    h = context @ w1 + b1
    h = h * jax.nn.sigmoid(h)
    p = h @ w2 + b2
    F = x.shape[1]
    gamma, beta = p[:, :F], p[:, F:]
    film = gamma[:, :, None] * x + beta[:, :, None]
    return film + x


if __name__ == "__main__":
    key = jax.random.PRNGKey(0)

    def make_case(k, B, F, L, Cctx, ctx_3d):
        ks = jax.random.split(k, 6)
        x = jax.random.normal(ks[0], (B, F, L), dtype=jnp.float32)
        cshape = (B, 1, Cctx) if ctx_3d else (B, Cctx)
        context = jax.random.normal(ks[1], cshape, dtype=jnp.float32)
        w1 = jax.random.normal(ks[2], (Cctx, 2 * F), dtype=jnp.float32) * 0.1
        b1 = jax.random.normal(ks[3], (2 * F,), dtype=jnp.float32) * 0.1
        w2 = jax.random.normal(ks[4], (2 * F, 2 * F), dtype=jnp.float32) * 0.1
        b2 = jax.random.normal(ks[5], (2 * F,), dtype=jnp.float32) * 0.1
        return x, context, w1, b1, w2, b2

    k1, k2 = jax.random.split(key)

    # Case 1: small shapes, 3-D context (exercises the squeeze(1) glue).
    args1 = make_case(k1, B=2, F=8, L=16, Cctx=32, ctx_3d=True)
    out1 = jax.block_until_ready(residual_film_forward(*args1))
    ref1 = residual_film_reference(*args1)
    assert out1.shape == args1[0].shape
    assert jnp.allclose(out1, ref1, atol=1e-5, rtol=1e-5), "case-1 mismatch"

    # Case 2: multiple lane-dense L tiles (L_tile=128 -> 3 grid steps along L).
    args2 = make_case(k2, B=3, F=16, L=384, Cctx=24, ctx_3d=False)
    out2 = jax.block_until_ready(residual_film_forward(*args2, max_l_tile=128))
    ref2 = residual_film_reference(*args2)
    assert out2.shape == args2[0].shape
    assert jnp.allclose(out2, ref2, atol=1e-5, rtol=1e-5), "case-2 mismatch"

    print("KERNEL_OK")
</pallas_src>

<mosaic_0001>
module attributes {stable_mosaic.version = 11 : i64} {
  func.func @residual_modulate_kernel(%arg0: i32, %arg1: i32, %arg2: memref<1x8x1xf32, #tpu.memory_space<vmem>>, %arg3: memref<1x8x1xf32, #tpu.memory_space<vmem>>, %arg4: memref<1x8x16xf32, #tpu.memory_space<vmem>>, %arg5: memref<1x8x16xf32, #tpu.memory_space<vmem>>) attributes {dimension_semantics = [#tpu.dimension_semantics<parallel>, #tpu.dimension_semantics<parallel>], iteration_bounds = array<i64: 2, 1>, scalar_prefetch = 0 : i64, scratch_operands = 0 : i64, tpu.core_type = #tpu.core_type<tc>, window_params = [{transform_indices = @transform_0, window_bounds = array<i64: 1, 8, 1>}, {transform_indices = @transform_1, window_bounds = array<i64: 1, 8, 1>}, {transform_indices = @transform_2, window_bounds = array<i64: 1, 8, 16>}, {transform_indices = @transform_3, window_bounds = array<i64: 1, 8, 16>}]} {
    %c0 = arith.constant 0 : index
    %c0_0 = arith.constant 0 : index
    %c0_1 = arith.constant 0 : index
    %0 = vector.load %arg4[%c0, %c0_0, %c0_1] : memref<1x8x16xf32, #tpu.memory_space<vmem>>, vector<1x8x16xf32>
    %c0_2 = arith.constant 0 : index
    %c0_3 = arith.constant 0 : index
    %c0_4 = arith.constant 0 : index
    %1 = vector.load %arg2[%c0_2, %c0_3, %c0_4] : memref<1x8x1xf32, #tpu.memory_space<vmem>>, vector<1x8x1xf32>
    %2 = vector.broadcast %1 : vector<1x8x1xf32> to vector<1x8x16xf32>
    %3 = arith.mulf %2, %0 : vector<1x8x16xf32>
    %c0_5 = arith.constant 0 : index
    %c0_6 = arith.constant 0 : index
    %c0_7 = arith.constant 0 : index
    %4 = vector.load %arg3[%c0_5, %c0_6, %c0_7] : memref<1x8x1xf32, #tpu.memory_space<vmem>>, vector<1x8x1xf32>
    %5 = vector.broadcast %4 : vector<1x8x1xf32> to vector<1x8x16xf32>
    %6 = arith.addf %3, %5 : vector<1x8x16xf32>
    %7 = arith.addf %6, %0 : vector<1x8x16xf32>
    %c0_8 = arith.constant 0 : index
    %c0_9 = arith.constant 0 : index
    %c0_10 = arith.constant 0 : index
    %8 = vector.load %arg5[%c0_8, %c0_9, %c0_10] : memref<1x8x16xf32, #tpu.memory_space<vmem>>, vector<1x8x16xf32>
    tpu.vector_store %arg5[%c0_8, %c0_9, %c0_10], %7 {strides = array<i32>} : memref<1x8x16xf32, #tpu.memory_space<vmem>>, vector<1x8x16xf32>,
    return
  }
  func.func @transform_0(%arg0: i32, %arg1: i32) -> (i32, i32, i32) {
    %c0_i32 = arith.constant 0 : i32
    %c0_i32_0 = arith.constant 0 : i32
    %c0_i32_1 = arith.constant 0 : i32
    return %arg0, %c0_i32, %c0_i32_0 : i32, i32, i32
  }
  func.func @transform_1(%arg0: i32, %arg1: i32) -> (i32, i32, i32) {
    %c0_i32 = arith.constant 0 : i32
    %c0_i32_0 = arith.constant 0 : i32
    %c0_i32_1 = arith.constant 0 : i32
    return %arg0, %c0_i32, %c0_i32_0 : i32, i32, i32
  }
  func.func @transform_2(%arg0: i32, %arg1: i32) -> (i32, i32, i32) {
    %c0_i32 = arith.constant 0 : i32
    %c0_i32_0 = arith.constant 0 : i32
    return %arg0, %c0_i32, %arg1 : i32, i32, i32
  }
  func.func @transform_3(%arg0: i32, %arg1: i32) -> (i32, i32, i32) {
    %c0_i32 = arith.constant 0 : i32
    %c0_i32_0 = arith.constant 0 : i32
    return %arg0, %c0_i32, %arg1 : i32, i32, i32
  }
}

</mosaic_0001>

<llo_original>
// kernel: tpu_custom_call.1
$region0: #{tpu_custom_call.1}
  #allocation0 [shape = 'u32[]', space=smem, size = 0x4, offset = 0x4, fixed_abs, tag = 'smem constant byte address 0x4 - core index']
  #allocation1 [shape = 'u32[144,128]{1,0:T(1,128)}', space=vmem, size = 0x12000, scoped, tag = 'internal scratch']
  %s0 = inlined_call_operand.hbm [shape: f32[2,8,1], index: 0, kind: input, shape index: {}]
  %s1 = inlined_call_operand.hbm [shape: f32[2,8,1], index: 1, kind: input, shape index: {}]
  %s2 = inlined_call_operand.hbm [shape: f32[2,8,16], index: 2, kind: input, shape index: {}]
  %s3 = inlined_call_operand.hbm [shape: f32[2,8,16], index: 3, kind: output, shape index: {}]
  %s4 = sld [smem:[#allocation0]]
  $region57: #{tpu_custom_call.1} parent=0
    _
  %s6 = ssub.s32 1, %s4
  %s7 = scalar_select 0, %s6, %s4
  $region1: #{tpu_custom_call.1} parent=0
    #allocation2 [shape = 'u8[8192]{0}', space=vmem, size = 0x2000, scoped, tag = 'input window, operand 0']
    #allocation3 [shape = 's32[2]{0}', space=sflag, size = 0x8, scoped, tag = 'scoped memory for tpu_custom_call.1']
    #allocation4 [shape = 's32[2]{0}', space=sflag, size = 0x8, scoped, tag = 'scoped memory for tpu_custom_call.1']
    #allocation5 [shape = 'u8[8192]{0}', space=vmem, size = 0x2000, scoped, tag = 'input window, operand 1']
    #allocation6 [shape = 's32[2]{0}', space=sflag, size = 0x8, scoped, tag = 'scoped memory for tpu_custom_call.1']
    #allocation7 [shape = 'u8[8192]{0}', space=vmem, size = 0x2000, scoped, tag = 'input window, operand 2']
    #allocation8 [shape = 'u8[8192]{0}', space=vmem, size = 0x2000, scoped, tag = 'output window, operand 0']
    %8 = vsyncpa [#allocation3], 0
    %s9 = scalar_lea.sflag [#allocation3], 1
    %10 = vsyncpa %s9, 0
    %11 = vsyncpa [#allocation6], 0
    %s12 = scalar_lea.sflag [#allocation6], 1
    %13 = vsyncpa %s12, 0
    %14 = vsyncpa [#allocation4], 0
    %s15 = scalar_lea.sflag [#allocation4], 1
    %16 = vsyncpa %s15, 0
    loop: start=0, step=1, limit=4
    $region2: #{tpu_custom_call.1} parent=1 // loop_pre_header
      _
    $region3: #{tpu_custom_call.1} parent=1 // loop_header
      %s18 = sphi 0, %s22
      %p19 = scmp.ge.s32.totalorder %s18, 4
      %s25 = sphi 0, %s37
      %s26 = sphi 0, %s33
      %s27 = sphi 0, %s25
      %s28 = sphi 0, %s26
      %s29 = sphi 0, %s27
      %s30 = sphi 0, %s28
      %s40 = sphi 0, %s42
      %s43 = sphi 0, %s40
      %s44 = sphi 0, %s43
      %s60 = sphi 0, %s44
      %s66 = sphi 0, %s68
      %s69 = sphi 0, %s66
      %s70 = sphi 0, %s69
      %s86 = sphi 0, %s70
      %s94 = sphi 0, %s96
      %s97 = sphi 0, %s94
      %s98 = sphi 0, %s97
      %s114 = sphi 0, %s98
      %s122 = sphi 0, %s124
      %s125 = sphi 0, %s122
      %s126 = sphi 0, %s125
      %s142 = sphi 0, %s126
    $region4: #{tpu_custom_call.1} parent=1 // loop_header_branch
      %21 = sbr.rel (%p19) target = $region8
    $region5: #{tpu_custom_call.1} parent=1 // loop_body
      %s23 = ssub.s32 %s18, 1
      %s24 = ssub.s32 %s18, 2
      %s31 = sadd.s32 1, %s26
      %p32 = scmp.ge.s32.totalorder %s31, 1
      %s33 = scalar_select %p32, 0, %s31
      %s34 = sadd.s32 1, %s25
      %s35 = scalar_select %p32, %s34, %s25
      %p36 = scmp.ge.s32.totalorder %s35, 2
      %s37 = scalar_select %p36, 0, %s35
      %s38 = ssub.s32 %s25, %s37
      %p39 = scmp.eq.s32.totalorder %s38, 0
      %s41 = sadd.s32 %s40, 1
      %s42 = scalar_select %p39, %s40, %s41
      %p45 = pneg %p39
      %p46 = scmp.eq.s32.totalorder %s18, 1
      %p47 = por %p45, %p46
      %p48 = scmp.ne.s32.totalorder %s40, %s43
      %p49 = scmp.eq.s32.totalorder %s18, 0
      %p50 = por %p48, %p49
      %p51 = scmp.ne.s32.totalorder %s40, %s43
      %p52 = scmp.eq.s32.totalorder %s23, 1
      %p53 = por %p51, %p52
      %p54 = scmp.ne.s32.totalorder %s43, %s44
      %p55 = scmp.eq.s32.totalorder %s23, 0
      %p56 = por %p54, %p55
      %p57 = scmp.ne.s32.totalorder %s43, %s44
      %p58 = scmp.eq.s32.totalorder %s24, 1
      %p59 = por %p57, %p58
      %p61 = scmp.ne.s32.totalorder %s44, %s60
      %p62 = scmp.eq.s32.totalorder %s24, 0
      %p63 = por %p61, %p62
      %s64 = ssub.s32 %s25, %s37
      %p65 = scmp.eq.s32.totalorder %s64, 0
      %s67 = sadd.s32 %s66, 1
      %s68 = scalar_select %p65, %s66, %s67
      %p71 = pneg %p65
      %p72 = scmp.eq.s32.totalorder %s18, 1
      %p73 = por %p71, %p72
      %p74 = scmp.ne.s32.totalorder %s66, %s69
      %p75 = scmp.eq.s32.totalorder %s18, 0
      %p76 = por %p74, %p75
      %p77 = scmp.ne.s32.totalorder %s66, %s69
      %p78 = scmp.eq.s32.totalorder %s23, 1
      %p79 = por %p77, %p78
      %p80 = scmp.ne.s32.totalorder %s69, %s70
      %p81 = scmp.eq.s32.totalorder %s23, 0
      %p82 = por %p80, %p81
      %p83 = scmp.ne.s32.totalorder %s69, %s70
      %p84 = scmp.eq.s32.totalorder %s24, 1
      %p85 = por %p83, %p84
      %p87 = scmp.ne.s32.totalorder %s70, %s86
      %p88 = scmp.eq.s32.totalorder %s24, 0
      %p89 = por %p87, %p88
      %s90 = ssub.s32 %s25, %s37
      %s91 = ssub.s32 %s26, %s33
      %s92 = sor.u32 %s90, %s91
      %p93 = scmp.eq.s32.totalorder %s92, 0
      %s95 = sadd.s32 %s94, 1
      %s96 = scalar_select %p93, %s94, %s95
      %p99 = pneg %p93
      %p100 = scmp.eq.s32.totalorder %s18, 1
      %p101 = por %p99, %p100
      %p102 = scmp.ne.s32.totalorder %s94, %s97
      %p103 = scmp.eq.s32.totalorder %s18, 0
      %p104 = por %p102, %p103
      %p105 = scmp.ne.s32.totalorder %s94, %s97
      %p106 = scmp.eq.s32.totalorder %s23, 1
      %p107 = por %p105, %p106
      %p108 = scmp.ne.s32.totalorder %s97, %s98
      %p109 = scmp.eq.s32.totalorder %s23, 0
      %p110 = por %p108, %p109
      %p111 = scmp.ne.s32.totalorder %s97, %s98
      %p112 = scmp.eq.s32.totalorder %s24, 1
      %p113 = por %p111, %p112
      %p115 = scmp.ne.s32.totalorder %s98, %s114
      %p116 = scmp.eq.s32.totalorder %s24, 0
      %p117 = por %p115, %p116
      %s118 = ssub.s32 %s25, %s37
      %s119 = ssub.s32 %s26, %s33
      %s120 = sor.u32 %s118, %s119
      %p121 = scmp.eq.s32.totalorder %s120, 0
      %s123 = sadd.s32 %s122, 1
      %s124 = scalar_select %p121, %s122, %s123
      %p127 = pneg %p121
      %p128 = scmp.eq.s32.totalorder %s18, 1
      %p129 = por %p127, %p128
      %p130 = scmp.ne.s32.totalorder %s122, %s125
      %p131 = scmp.eq.s32.totalorder %s18, 0
      %p132 = por %p130, %p131
      %p133 = scmp.ne.s32.totalorder %s122, %s125
      %p134 = scmp.eq.s32.totalorder %s23, 1
      %p135 = por %p133, %p134
      %p136 = scmp.ne.s32.totalorder %s125, %s126
      %p137 = scmp.eq.s32.totalorder %s23, 0
      %p138 = por %p136, %p137
      %p139 = scmp.ne.s32.totalorder %s125, %s126
      %p140 = scmp.eq.s32.totalorder %s24, 1
      %p141 = por %p139, %p140
      %p143 = scmp.ne.s32.totalorder %s126, %s142
      %p144 = scmp.eq.s32.totalorder %s24, 0
      %p145 = por %p143, %p144
      %p146 = scmp.le.s32.totalorder 1, %s18
      %p147 = scmp.lt.s32.totalorder %s18, 3
      %p148 = pnand %p146, %p147
      %p149 = pneg %p148
      // Predicated region
      $region9: #{tpu_custom_call.1} parent=5 // pred_check
        _
      $region10: #{tpu_custom_call.1} parent=5 // pred_check_branch
        %151 = sbr.rel (%p148) target = $region12
      $region11: #{tpu_custom_call.1} parent=5 // pred_region
        %s152 = ssub.s32 %s18, 1
      $region12: #{tpu_custom_call.1} parent=5 // pred_fallthru
        _
      %p153 = scmp.lt.s32.totalorder %s18, 2
      // Predicated region
      $region13: #{tpu_custom_call.1} parent=5 // pred_check
        %p154 = pneg %p153
      $region14: #{tpu_custom_call.1} parent=5 // pred_check_branch
        %156 = sbr.rel (%p154) target = $region16
      $region15: #{tpu_custom_call.1} parent=5 // pred_region
        // Predicated region
        $region17: #{tpu_custom_call.1} parent=15 // pred_check
          %p157 = pneg %p50
        $region18: #{tpu_custom_call.1} parent=15 // pred_check_branch
          %159 = sbr.rel (%p157) target = $region20
        $region19: #{tpu_custom_call.1} parent=15 // pred_region
          %s160 = sand.u32 %s40, 1
          %s161 = scalar_lea.sflag [#allocation3], %s160
          %s162 = sand.u32 %s40, 1
          %s163 = smul.addr %s162, 8
          %s164 = scalar_lea.vmem [#allocation2], %s163
          %s166 = ssub.s32 128, 128
          %167 = vsyncadd %s161, %s166
          %s168 = smul.addr %s25, 128
          %s169 = scalar_lea.hbm %s0, %s168
          %s171 = sshll.u32 %s164, 4
          %s172 = int_to_ptr.vmem [resolvable:$true] %s171
          %174 = dma.hbm_to_vmem [thread:$0]  %s169, 128, %s172, %s161
        $region20: #{tpu_custom_call.1} parent=15 // pred_fallthru
          _
        // Predicated region
        $region21: #{tpu_custom_call.1} parent=15 // pred_check
          %p175 = pneg %p76
        $region22: #{tpu_custom_call.1} parent=15 // pred_check_branch
          %177 = sbr.rel (%p175) target = $region24
        $region23: #{tpu_custom_call.1} parent=15 // pred_region
          %s178 = sand.u32 %s18, 1
          %s179 = scalar_lea.sflag [#allocation6], %s178
          %s180 = sand.u32 %s66, 1
          %s181 = smul.addr %s180, 8
          %s182 = scalar_lea.vmem [#allocation5], %s181
          %s184 = ssub.s32 128, 128
          %185 = vsyncadd %s179, %s184
          %s186 = smul.addr %s25, 128
          %s187 = scalar_lea.hbm %s1, %s186
          %s189 = sshll.u32 %s182, 4
          %s190 = int_to_ptr.vmem [resolvable:$true] %s189
          %192 = dma.hbm_to_vmem [thread:$0]  %s187, 128, %s190, %s179
        $region24: #{tpu_custom_call.1} parent=15 // pred_fallthru
          _
        // Predicated region
        $region25: #{tpu_custom_call.1} parent=15 // pred_check
          %p193 = pneg %p104
        $region26: #{tpu_custom_call.1} parent=15 // pred_check_branch
          %195 = sbr.rel (%p193) target = $region28
        $region27: #{tpu_custom_call.1} parent=15 // pred_region
          %s196 = sand.u32 %s18, 1
          %s197 = scalar_lea.sflag [#allocation6], %s196
          %s198 = sand.u32 %s94, 1
          %s199 = smul.addr %s198, 8
          %s200 = scalar_lea.vmem [#allocation7], %s199
          %s202 = ssub.s32 128, 128
          %203 = vsyncadd %s197, %s202
          %s204 = sadd.s32 %s26, %s25
          %s205 = smul.addr %s204, 128
          %s206 = scalar_lea.hbm %s2, %s205
          %s208 = sshll.u32 %s200, 4
          %s209 = int_to_ptr.vmem [resolvable:$true] %s208
          %211 = dma.hbm_to_vmem [thread:$0]  %s206, 128, %s209, %s197
        $region28: #{tpu_custom_call.1} parent=15 // pred_fallthru
          _
      $region16: #{tpu_custom_call.1} parent=5 // pred_fallthru
        _
      %p212 = scmp.le.s32.totalorder 1, %s18
      %p213 = scmp.lt.s32.totalorder %s18, 3
      %p214 = pnand %p212, %p213
      %p215 = pneg %p214
      // Predicated region
      $region29: #{tpu_custom_call.1} parent=5 // pred_check
        _
      $region30: #{tpu_custom_call.1} parent=5 // pred_check_branch
        %217 = sbr.rel (%p214) target = $region32
      $region31: #{tpu_custom_call.1} parent=5 // pred_region
        %s218 = ssub.s32 %s18, 1
        %s219 = sand.u32 %s43, 1
        %s220 = scalar_lea.sflag [#allocation3], %s219
        %s221 = sand.u32 %s43, 1
        %s222 = smul.addr %s221, 8
        %s223 = scalar_lea.vmem [#allocation2], %s222
        // Predicated region
        $region33: #{tpu_custom_call.1} parent=31 // pred_check
          %p224 = pneg %p56
        $region34: #{tpu_custom_call.1} parent=31 // pred_check_branch
          %226 = sbr.rel (%p224) target = $region36
        $region35: #{tpu_custom_call.1} parent=31 // pred_region
          %227 = dma.done %s220, 128
        $region36: #{tpu_custom_call.1} parent=31 // pred_fallthru
          _
        %s228 = sand.u32 %s23, 1
        %s229 = scalar_lea.sflag [#allocation6], %s228
        %s230 = sand.u32 %s69, 1
        %s231 = smul.addr %s230, 8
        %s232 = scalar_lea.vmem [#allocation5], %s231
        // Predicated region
        $region37: #{tpu_custom_call.1} parent=31 // pred_check
          %p233 = pneg %p82
        $region38: #{tpu_custom_call.1} parent=31 // pred_check_branch
          %235 = sbr.rel (%p233) target = $region40
        $region39: #{tpu_custom_call.1} parent=31 // pred_region
          %236 = dma.done %s229, 128
        $region40: #{tpu_custom_call.1} parent=31 // pred_fallthru
          _
        %s237 = sand.u32 %s23, 1
        %s238 = scalar_lea.sflag [#allocation6], %s237
        %s239 = sand.u32 %s97, 1
        %s240 = smul.addr %s239, 8
        %s241 = scalar_lea.vmem [#allocation7], %s240
        // Predicated region
        $region41: #{tpu_custom_call.1} parent=31 // pred_check
          %p242 = pneg %p110
        $region42: #{tpu_custom_call.1} parent=31 // pred_check_branch
          %244 = sbr.rel (%p242) target = $region44
        $region43: #{tpu_custom_call.1} parent=31 // pred_region
          %245 = dma.done %s238, 128
        $region44: #{tpu_custom_call.1} parent=31 // pred_fallthru
          _
        %s246 = sand.u32 %s43, 1
        %s247 = scalar_lea.sflag [#allocation3], %s246
        %s248 = sand.u32 %s43, 1
        %s249 = smul.addr %s248, 8
        %s250 = scalar_lea.vmem [#allocation2], %s249
        %p251 = pneg %p56
        %p252 = pneg %p53
        %s253 = sand.u32 %s23, 1
        %s254 = scalar_lea.sflag [#allocation6], %s253
        %s255 = sand.u32 %s69, 1
        %s256 = smul.addr %s255, 8
        %s257 = scalar_lea.vmem [#allocation5], %s256
        %p258 = pneg %p82
        %p259 = pneg %p79
        %s260 = sand.u32 %s23, 1
        %s261 = scalar_lea.sflag [#allocation6], %s260
        %s262 = sand.u32 %s97, 1
        %s263 = smul.addr %s262, 8
        %s264 = scalar_lea.vmem [#allocation7], %s263
        %p265 = pneg %p110
        %p266 = pneg %p107
        %p267 = pneg %p138
        %p268 = pneg %p135
        %s269 = sand.u32 %s125, 1
        %s270 = scalar_lea.sflag [#allocation4], %s269
        %s271 = sand.u32 %s125, 1
        %s272 = smul.addr %s271, 8
        %s273 = scalar_lea.vmem [#allocation8], %s272
        %v274 = vld [vmem:[%s241] sm:$0xff]
        %v275 = vld [vmem:[%s223] sm:$0xff]
        %277 = vset.pattern.permute.xlu0 0
        %278 = vperm.xlu0 %277, %v275
        %v279 = vpop.permute.xlu0 %278
        %v281 = vmul.f32 %v279, %v274
        %v282 = vld [vmem:[%s232] sm:$0xff]
        %284 = vset.pattern.permute.xlu0 0
        %285 = vperm.xlu0 %284, %v282
        %v286 = vpop.permute.xlu0 %285
        %v288 = vadd.f32 %v281, %v286
        %v289 = vadd.f32 %v288, %v274
        %vm290 = vcmask 130048
        %291 = vst.msk [vmem:[%s273] sm:$0xff] %vm290, %v289
        %s292 = sand.u32 %s125, 1
        %s293 = scalar_lea.sflag [#allocation4], %s292
        %s294 = sand.u32 %s125, 1
        %s295 = smul.addr %s294, 8
        %s296 = scalar_lea.vmem [#allocation8], %s295
        // Predicated region
        $region45: #{tpu_custom_call.1} parent=31 // pred_check
          %p297 = pneg %p135
        $region46: #{tpu_custom_call.1} parent=31 // pred_check_branch
          %299 = sbr.rel (%p297) target = $region48
        $region47: #{tpu_custom_call.1} parent=31 // pred_region
          %s301 = ssub.s32 128, 128
          %302 = vsyncadd %s293, %s301
          %s303 = sadd.s32 %s28, %s27
          %s304 = smul.addr %s303, 128
          %s305 = scalar_lea.hbm %s3, %s304
          %s307 = sshll.u32 %s296, 4
          %s308 = int_to_ptr.vmem [resolvable:$true] %s307
          %310 = dma.vmem_to_hbm [thread:$0]  %s308, 128, %s305, %s293
        $region48: #{tpu_custom_call.1} parent=31 // pred_fallthru
          _
      $region32: #{tpu_custom_call.1} parent=5 // pred_fallthru
        _
      %p311 = scmp.le.s32.totalorder 2, %s18
      // Predicated region
      $region49: #{tpu_custom_call.1} parent=5 // pred_check
        %p312 = pneg %p311
      $region50: #{tpu_custom_call.1} parent=5 // pred_check_branch
        %314 = sbr.rel (%p312) target = $region52
      $region51: #{tpu_custom_call.1} parent=5 // pred_region
        %s315 = ssub.s32 %s18, 2
        // Predicated region
        $region53: #{tpu_custom_call.1} parent=51 // pred_check
          %p316 = pneg %p141
        $region54: #{tpu_custom_call.1} parent=51 // pred_check_branch
          %318 = sbr.rel (%p316) target = $region56
        $region55: #{tpu_custom_call.1} parent=51 // pred_region
          %s319 = sand.u32 %s126, 1
          %s320 = scalar_lea.sflag [#allocation4], %s319
          %s321 = sand.u32 %s126, 1
          %s322 = smul.addr %s321, 8
          %s323 = scalar_lea.vmem [#allocation8], %s322
          %324 = dma.done %s320, 128
        $region56: #{tpu_custom_call.1} parent=51 // pred_fallthru
          _
      $region52: #{tpu_custom_call.1} parent=5 // pred_fallthru
        _
    $region6: #{tpu_custom_call.1} parent=1 // loop_footer
      %s22 = sadd.s32 1, %s18
    $region7: #{tpu_custom_call.1} parent=1 // loop_footer_branch
      %17 = sbr.rel target = $region3
    $region8: #{tpu_custom_call.1} parent=1 // loop_exit
      _
    %325 = vsyncpa [#allocation3], 1
    %s326 = scalar_lea.sflag [#allocation3], 1
    %327 = vsyncpa %s326, 1
    %328 = vsyncpa [#allocation6], 1
    %s329 = scalar_lea.sflag [#allocation6], 1
    %330 = vsyncpa %s329, 1
    %331 = vsyncpa [#allocation4], 1
    %s332 = scalar_lea.sflag [#allocation4], 1
    %333 = vsyncpa %s332, 1

</llo_original>
